<compile_context>
chip_gen: v6e
topology: v6e:2x2x1
jax: 0.10.0
libtpu: 0.0.40
codegen_flags: <defaults>
</compile_context>

<pallas_src>
import functools

import jax
import jax.numpy as jnp
from jax import lax
from jax.experimental import pallas as pl
from jax.experimental.pallas import tpu as pltpu

_MiB = 1024 * 1024


@functools.lru_cache(maxsize=None)
def _roll_mode():
    """Pick the lane-rotate implementation once per process.

    Returns "pltpu" / "pltpu_flipped" depending on pltpu.roll's shift
    convention, or "jnp" if pltpu.roll cannot be used (correctness-safe
    fallback to the slice+concat jnp.roll lowering).
    """
    try:
        shape = (2, 8, 32)
        x = jnp.arange(shape[0] * shape[1] * shape[2], dtype=jnp.int32).reshape(shape)

        def probe(x_ref, o_ref):
            o_ref[...] = pltpu.roll(x_ref[...], 5, 2)

        out = pl.pallas_call(
            probe, out_shape=jax.ShapeDtypeStruct(shape, jnp.int32))(x)
        out = jax.block_until_ready(out)
        if bool(jnp.all(out == jnp.roll(x, 5, axis=2))):
            return "pltpu"
        if bool(jnp.all(out == jnp.roll(x, -5, axis=2))):
            return "pltpu_flipped"
        return "jnp"
    except Exception:  # safety net only
        return "jnp"


def _roll_lanes(v, shift, size, mode):
    """result[..., l] = v[..., (l - shift) % size]  (jnp.roll convention)."""
    shift = shift % size
    if shift == 0:
        return v
    if mode == "jnp":
        return jnp.roll(v, shift, axis=2)
    if mode == "pltpu_flipped":
        shift = size - shift
    return pltpu.roll(v, shift, 2)


def _s2d_kernel(x_ref, o_ref, *, w, w_pad, w_half, roll_mode):
    """De-interleave one block.

    x_ref: (B, R, 2*w) block; row r = c*(H/2)+i holds input image rows
           (2i, 2i+1) of channel c back to back (unpadded).
    o_ref: (B, 4, R, w_half) block; axis 1 is the torch.cat parity order
           (h even/w even, h odd/w even, h even/w odd, h odd/w odd).
    """
    x = x_ref[...]
    blk_b, blk_r, _ = x.shape
    L = 2 * w_pad
    quarter = w_pad // 2

    # Pad each of the two rows to a power-of-two width in VMEM (no HBM-side
    # jnp.pad copy).  No-op when W is already a power of two.
    if w_pad != w:
        zpad = jnp.zeros((blk_b, blk_r, w_pad - w), dtype=x.dtype)
        y = jnp.concatenate([x[:, :, :w], zpad, x[:, :, w:], zpad], axis=2)
    else:
        y = x

    # Hoisted, lane-only mask math: one (1, 1, L) int32 iota, masks precomputed
    # per round; only the selects inside the loop run at full block width.
    lanes = lax.broadcasted_iota(jnp.int32, (1, 1, L), 2)
    rounds = []
    blk = 4
    while blk <= L // 2:
        s = blk // 4
        pos = lanes & (blk - 1)            # lane position inside its blk window
        is_q2 = (pos >= s) & (pos < 2 * s)
        is_q3 = (pos >= 2 * s) & (pos < 3 * s)
        rounds.append((s, is_q2, is_q3))
        blk *= 2

    # Perfect unshuffle of each w_pad-lane half (one image row per half): for
    # window sizes blk = 4..L/2, swap the 2nd and 3rd quarters of every aligned
    # blk-wide lane window.  Rolls go to the XLU; (1,1,L) masks broadcast.
    for s, is_q2, is_q3 in rounds:
        fwd = _roll_lanes(y, -s, L, roll_mode)   # fwd[l] = y[l + s]
        bwd = _roll_lanes(y, s, L, roll_mode)    # bwd[l] = y[l - s]
        y = jnp.where(is_q2, fwd, jnp.where(is_q3, bwd, y))

    # Lane quarters of y are now:
    #   [h-even/w-even | h-even/w-odd | h-odd/w-even | h-odd/w-odd]
    # torch.cat order is (ee, oe, eo, oo) -> source quarters (0, 2, 1, 3).
    # Static slices only; pad garbage never lands inside the extracted ranges.
    for p_idx, src_quarter in enumerate((0, 2, 1, 3)):
        start = src_quarter * quarter
        o_ref[:, p_idx, :, :] = y[:, :, start:start + w_half]


def space_to_depth(x, *, block_budget_bytes=None):
    """NCHW space_to_depth: (N, C, H, W) -> (N, 4*C, H//2, W//2)."""
    N, C, H, W = x.shape
    if H % 2 or W % 2:
        raise ValueError("spatial dims must be even")
    Hh, Wh = H // 2, W // 2
    R = C * Hh                                 # (channel, output-row) pairs
    Wp = 1 << (W - 1).bit_length()             # per-row power-of-two width
    L = 2 * Wp
    itemsize = jnp.dtype(x.dtype).itemsize

    # Free contiguous reshape: row r = c*Hh + i holds input rows (2i, 2i+1) of
    # channel c concatenated along lanes (unpadded; padding happens in VMEM).
    xr = x.reshape(N, R, 2 * W)

    # ---- VMEM limit per generation (v5e/v6e: 128 MiB phys, v7x: 64 MiB).
    try:
        vmem_cap = int(pltpu.get_tpu_info().vmem_capacity_bytes)
    except Exception:
        vmem_cap = 64 * _MiB
    if vmem_cap < 32 * _MiB:
        vmem_cap = 64 * _MiB
    vmem_limit = min((vmem_cap * 3) // 4, 100 * _MiB)

    # ---- per-row VMEM working set: lane-padded in/out rows (x2 for the
    # BlockSpec double buffers) plus ~3 roll/select temporaries at width L.
    in_minor = pl.cdiv(2 * W, 128) * 128
    tmp_minor = pl.cdiv(L, 128) * 128
    out_minor = pl.cdiv(Wh, 128) * 128
    row_bytes = (2 * in_minor + 2 * 4 * out_minor + 3 * tmp_minor) * itemsize

    budget = block_budget_bytes if block_budget_bytes is not None else max(
        8 * _MiB, vmem_limit // 2)
    budget = min(budget, vmem_limit)

    # ---- row tile: dtype-aware sublane quantum (8 / 16 / 32 for 4/2/1 byte).
    sub = {4: 8, 2: 16, 1: 32}.get(itemsize, 8)
    r_choices = [d for d in range(sub, R + 1, sub) if R % d == 0]
    if not r_choices and sub != 8:
        r_choices = [d for d in range(8, R + 1, 8) if R % d == 0]
    if not r_choices:
        r_choices = [R]                        # full extent is always legal
    fits = [r for r in r_choices if r * row_bytes <= budget]
    r_tile = max(fits) if fits else min(r_choices)   # never silently take full R

    # ---- batch tile: several images per grid step while staying in budget.
    b_choices = [d for d in range(1, N + 1) if N % d == 0]
    b_fits = [b for b in b_choices if b * r_tile * row_bytes <= budget]
    b_tile = max(b_fits) if b_fits else 1

    # ---- keep the grid large enough for pipelining / v7x megacore split:
    # aim for >=4 steps (>=2 on a parallel axis) when the shapes allow it.
    while (N // b_tile) * (R // r_tile) < 4:
        smaller_b = [b for b in b_choices if b < b_tile]
        smaller_r = [r for r in r_choices if r < r_tile]
        if smaller_b:
            b_tile = max(smaller_b)
        elif smaller_r:
            r_tile = max(smaller_r)
        else:
            break

    grid = (N // b_tile, R // r_tile)

    out = pl.pallas_call(
        functools.partial(_s2d_kernel, w=W, w_pad=Wp, w_half=Wh,
                          roll_mode=_roll_mode()),
        out_shape=jax.ShapeDtypeStruct((N, 4, R, Wh), x.dtype),
        grid=grid,
        in_specs=[pl.BlockSpec((b_tile, r_tile, 2 * W), lambda b, r: (b, r, 0))],
        out_specs=pl.BlockSpec((b_tile, 4, r_tile, Wh), lambda b, r: (b, 0, r, 0)),
        compiler_params=pltpu.CompilerParams(
            dimension_semantics=("parallel", "parallel"),
            vmem_limit_bytes=int(vmem_limit)),
    )(xr)

    # Same memory as (N, 4, C, Hh, Wh); free reshape to the PyTorch layout.
    return out.reshape(N, 4 * C, Hh, Wh)


def _reference(x):
    return jnp.concatenate(
        [x[..., ::2, ::2], x[..., 1::2, ::2], x[..., ::2, 1::2], x[..., 1::2, 1::2]],
        axis=1)


if __name__ == "__main__":
    key = jax.random.PRNGKey(0)
    k1, k2 = jax.random.split(key)

    # Primary case: power-of-two W (tinyimagenet-style scale).
    x = jax.random.normal(k1, (2, 4, 16, 16), dtype=jnp.float32)
    out = jax.block_until_ready(space_to_depth(x))
    ref = _reference(x)
    assert out.shape == ref.shape == (2, 16, 8, 8), (out.shape, ref.shape)
    assert out.dtype == ref.dtype
    assert jnp.array_equal(out, ref), "mismatch vs reference (pow2 W)"

    # Non-power-of-two W: exercises the in-kernel (VMEM) padding path and the
    # full-extent row-tile fallback flagged in the review.
    x2 = jax.random.normal(k2, (2, 3, 12, 20), dtype=jnp.float32)
    out2 = jax.block_until_ready(space_to_depth(x2))
    ref2 = _reference(x2)
    assert out2.shape == ref2.shape == (2, 12, 6, 10), (out2.shape, ref2.shape)
    assert jnp.array_equal(out2, ref2), "mismatch vs reference (non-pow2 W)"

    print("KERNEL_OK")
</pallas_src>

<mosaic_0001>
module attributes {stable_mosaic.version = 11 : i64} {
  func.func @probe(%arg0: memref<2x8x32xi32, #tpu.memory_space<vmem>>, %arg1: memref<2x8x32xi32, #tpu.memory_space<vmem>>) attributes {dimension_semantics = [], scalar_prefetch = 0 : i64, scratch_operands = 0 : i64, tpu.core_type = #tpu.core_type<tc>} {
    %c0 = arith.constant 0 : index
    %c0_0 = arith.constant 0 : index
    %c0_1 = arith.constant 0 : index
    %0 = vector.load %arg0[%c0, %c0_0, %c0_1] : memref<2x8x32xi32, #tpu.memory_space<vmem>>, vector<2x8x32xi32>
    %c5_i32 = arith.constant 5 : i32
    %1 = tpu.dynamic_rotate %0 by %c5_i32 dim 2 : vector<2x8x32xi32>, i32 -> vector<2x8x32xi32>
    %c0_2 = arith.constant 0 : index
    %c0_3 = arith.constant 0 : index
    %c0_4 = arith.constant 0 : index
    %2 = vector.load %arg1[%c0_2, %c0_3, %c0_4] : memref<2x8x32xi32, #tpu.memory_space<vmem>>, vector<2x8x32xi32>
    tpu.vector_store %arg1[%c0_2, %c0_3, %c0_4], %1 {strides = array<i32>} : memref<2x8x32xi32, #tpu.memory_space<vmem>>, vector<2x8x32xi32>,
    return
  }
}

module attributes {stable_mosaic.version = 11 : i64} {
  func.func @_s2d_kernel(%arg0: i32, %arg1: i32, %arg2: memref<1x16x32xf32, #tpu.memory_space<vmem>>, %arg3: memref<1x4x16x8xf32, #tpu.memory_space<vmem>>) attributes {dimension_semantics = [#tpu.dimension_semantics<parallel>, #tpu.dimension_semantics<parallel>], iteration_bounds = array<i64: 2, 2>, scalar_prefetch = 0 : i64, scratch_operands = 0 : i64, tpu.core_type = #tpu.core_type<tc>, window_params = [{transform_indices = @transform_0, window_bounds = array<i64: 1, 16, 32>}, {transform_indices = @transform_1, window_bounds = array<i64: 1, 4, 16, 8>}]} {
    %c0 = arith.constant 0 : index
    %c0_0 = arith.constant 0 : index
    %c0_1 = arith.constant 0 : index
    %0 = vector.load %arg2[%c0, %c0_0, %c0_1] : memref<1x16x32xf32, #tpu.memory_space<vmem>>, vector<1x16x32xf32>
    %1 = tpu.iota {dimensions = array<i32: 2>} : vector<1x1x32xi32>
    %c3_i32 = arith.constant 3 : i32
    %2 = vector.broadcast %c3_i32 : i32 to vector<1x1x32xi32>
    %3 = arith.andi %1, %2 : vector<1x1x32xi32>
    %c1_i32 = arith.constant 1 : i32
    %4 = vector.broadcast %c1_i32 : i32 to vector<1x1x32xi32>
    %5 = arith.cmpi sge, %3, %4 : vector<1x1x32xi32>
    %c2_i32 = arith.constant 2 : i32
    %6 = vector.broadcast %c2_i32 : i32 to vector<1x1x32xi32>
    %7 = arith.cmpi slt, %3, %6 : vector<1x1x32xi32>
    %8 = arith.andi %5, %7 : vector<1x1x32xi1>
    %c2_i32_2 = arith.constant 2 : i32
    %9 = vector.broadcast %c2_i32_2 : i32 to vector<1x1x32xi32>
    %10 = arith.cmpi sge, %3, %9 : vector<1x1x32xi32>
    %c3_i32_3 = arith.constant 3 : i32
    %11 = vector.broadcast %c3_i32_3 : i32 to vector<1x1x32xi32>
    %12 = arith.cmpi slt, %3, %11 : vector<1x1x32xi32>
    %13 = arith.andi %10, %12 : vector<1x1x32xi1>
    %c7_i32 = arith.constant 7 : i32
    %14 = vector.broadcast %c7_i32 : i32 to vector<1x1x32xi32>
    %15 = arith.andi %1, %14 : vector<1x1x32xi32>
    %c2_i32_4 = arith.constant 2 : i32
    %16 = vector.broadcast %c2_i32_4 : i32 to vector<1x1x32xi32>
    %17 = arith.cmpi sge, %15, %16 : vector<1x1x32xi32>
    %c4_i32 = arith.constant 4 : i32
    %18 = vector.broadcast %c4_i32 : i32 to vector<1x1x32xi32>
    %19 = arith.cmpi slt, %15, %18 : vector<1x1x32xi32>
    %20 = arith.andi %17, %19 : vector<1x1x32xi1>
    %c4_i32_5 = arith.constant 4 : i32
    %21 = vector.broadcast %c4_i32_5 : i32 to vector<1x1x32xi32>
    %22 = arith.cmpi sge, %15, %21 : vector<1x1x32xi32>
    %c6_i32 = arith.constant 6 : i32
    %23 = vector.broadcast %c6_i32 : i32 to vector<1x1x32xi32>
    %24 = arith.cmpi slt, %15, %23 : vector<1x1x32xi32>
    %25 = arith.andi %22, %24 : vector<1x1x32xi1>
    %c15_i32 = arith.constant 15 : i32
    %26 = vector.broadcast %c15_i32 : i32 to vector<1x1x32xi32>
    %27 = arith.andi %1, %26 : vector<1x1x32xi32>
    %c4_i32_6 = arith.constant 4 : i32
    %28 = vector.broadcast %c4_i32_6 : i32 to vector<1x1x32xi32>
    %29 = arith.cmpi sge, %27, %28 : vector<1x1x32xi32>
    %c8_i32 = arith.constant 8 : i32
    %30 = vector.broadcast %c8_i32 : i32 to vector<1x1x32xi32>
    %31 = arith.cmpi slt, %27, %30 : vector<1x1x32xi32>
    %32 = arith.andi %29, %31 : vector<1x1x32xi1>
    %c8_i32_7 = arith.constant 8 : i32
    %33 = vector.broadcast %c8_i32_7 : i32 to vector<1x1x32xi32>
    %34 = arith.cmpi sge, %27, %33 : vector<1x1x32xi32>
    %c12_i32 = arith.constant 12 : i32
    %35 = vector.broadcast %c12_i32 : i32 to vector<1x1x32xi32>
    %36 = arith.cmpi slt, %27, %35 : vector<1x1x32xi32>
    %37 = arith.andi %34, %36 : vector<1x1x32xi1>
    %38 = vector.extract_strided_slice %0 {offsets = [0, 0, 1], sizes = [1, 16, 31], strides = [1, 1, 1]} : vector<1x16x32xf32> to vector<1x16x31xf32>
    %39 = vector.extract_strided_slice %0 {offsets = [0, 0, 0], sizes = [1, 16, 1], strides = [1, 1, 1]} : vector<1x16x32xf32> to vector<1x16x1xf32>
    %40 = tpu.concatenate %38, %39 in 2 : vector<1x16x31xf32>, vector<1x16x1xf32> -> vector<1x16x32xf32>
    %41 = vector.extract_strided_slice %0 {offsets = [0, 0, 31], sizes = [1, 16, 1], strides = [1, 1, 1]} : vector<1x16x32xf32> to vector<1x16x1xf32>
    %42 = vector.extract_strided_slice %0 {offsets = [0, 0, 0], sizes = [1, 16, 31], strides = [1, 1, 1]} : vector<1x16x32xf32> to vector<1x16x31xf32>
    %43 = tpu.concatenate %41, %42 in 2 : vector<1x16x1xf32>, vector<1x16x31xf32> -> vector<1x16x32xf32>
    %44 = vector.shape_cast %13 : vector<1x1x32xi1> to vector<1x1x32xi1>
    %45 = vector.broadcast %44 : vector<1x1x32xi1> to vector<1x16x32xi1>
    %46 = arith.select %45, %43, %0 : vector<1x16x32xi1>, vector<1x16x32xf32>
    %47 = vector.shape_cast %8 : vector<1x1x32xi1> to vector<1x1x32xi1>
    %48 = vector.broadcast %47 : vector<1x1x32xi1> to vector<1x16x32xi1>
    %49 = arith.select %48, %40, %46 : vector<1x16x32xi1>, vector<1x16x32xf32>
    %50 = vector.extract_strided_slice %49 {offsets = [0, 0, 2], sizes = [1, 16, 30], strides = [1, 1, 1]} : vector<1x16x32xf32> to vector<1x16x30xf32>
    %51 = vector.extract_strided_slice %49 {offsets = [0, 0, 0], sizes = [1, 16, 2], strides = [1, 1, 1]} : vector<1x16x32xf32> to vector<1x16x2xf32>
    %52 = tpu.concatenate %50, %51 in 2 : vector<1x16x30xf32>, vector<1x16x2xf32> -> vector<1x16x32xf32>
    %53 = vector.extract_strided_slice %49 {offsets = [0, 0, 30], sizes = [1, 16, 2], strides = [1, 1, 1]} : vector<1x16x32xf32> to vector<1x16x2xf32>
    %54 = vector.extract_strided_slice %49 {offsets = [0, 0, 0], sizes = [1, 16, 30], strides = [1, 1, 1]} : vector<1x16x32xf32> to vector<1x16x30xf32>
    %55 = tpu.concatenate %53, %54 in 2 : vector<1x16x2xf32>, vector<1x16x30xf32> -> vector<1x16x32xf32>
    %56 = vector.shape_cast %25 : vector<1x1x32xi1> to vector<1x1x32xi1>
    %57 = vector.broadcast %56 : vector<1x1x32xi1> to vector<1x16x32xi1>
    %58 = arith.select %57, %55, %49 : vector<1x16x32xi1>, vector<1x16x32xf32>
    %59 = vector.shape_cast %20 : vector<1x1x32xi1> to vector<1x1x32xi1>
    %60 = vector.broadcast %59 : vector<1x1x32xi1> to vector<1x16x32xi1>
    %61 = arith.select %60, %52, %58 : vector<1x16x32xi1>, vector<1x16x32xf32>
    %62 = vector.extract_strided_slice %61 {offsets = [0, 0, 4], sizes = [1, 16, 28], strides = [1, 1, 1]} : vector<1x16x32xf32> to vector<1x16x28xf32>
    %63 = vector.extract_strided_slice %61 {offsets = [0, 0, 0], sizes = [1, 16, 4], strides = [1, 1, 1]} : vector<1x16x32xf32> to vector<1x16x4xf32>
    %64 = tpu.concatenate %62, %63 in 2 : vector<1x16x28xf32>, vector<1x16x4xf32> -> vector<1x16x32xf32>
    %65 = vector.extract_strided_slice %61 {offsets = [0, 0, 28], sizes = [1, 16, 4], strides = [1, 1, 1]} : vector<1x16x32xf32> to vector<1x16x4xf32>
    %66 = vector.extract_strided_slice %61 {offsets = [0, 0, 0], sizes = [1, 16, 28], strides = [1, 1, 1]} : vector<1x16x32xf32> to vector<1x16x28xf32>
    %67 = tpu.concatenate %65, %66 in 2 : vector<1x16x4xf32>, vector<1x16x28xf32> -> vector<1x16x32xf32>
    %68 = vector.shape_cast %37 : vector<1x1x32xi1> to vector<1x1x32xi1>
    %69 = vector.broadcast %68 : vector<1x1x32xi1> to vector<1x16x32xi1>
    %70 = arith.select %69, %67, %61 : vector<1x16x32xi1>, vector<1x16x32xf32>
    %71 = vector.shape_cast %32 : vector<1x1x32xi1> to vector<1x1x32xi1>
    %72 = vector.broadcast %71 : vector<1x1x32xi1> to vector<1x16x32xi1>
    %73 = arith.select %72, %64, %70 : vector<1x16x32xi1>, vector<1x16x32xf32>
    %74 = vector.extract_strided_slice %73 {offsets = [0, 0, 0], sizes = [1, 16, 8], strides = [1, 1, 1]} : vector<1x16x32xf32> to vector<1x16x8xf32>
    %c0_8 = arith.constant 0 : index
    %c0_9 = arith.constant 0 : index
    %c0_10 = arith.constant 0 : index
    %c0_11 = arith.constant 0 : index
    %75 = vector.load %arg3[%c0_8, %c0_9, %c0_10, %c0_11] : memref<1x4x16x8xf32, #tpu.memory_space<vmem>>, vector<1x1x16x8xf32>
    %76 = vector.shape_cast %75 : vector<1x1x16x8xf32> to vector<1x16x8xf32>
    %77 = vector.shape_cast %74 : vector<1x16x8xf32> to vector<1x1x16x8xf32>
    tpu.vector_store %arg3[%c0_8, %c0_9, %c0_10, %c0_11], %77 {strides = array<i32>} : memref<1x4x16x8xf32, #tpu.memory_space<vmem>>, vector<1x1x16x8xf32>,
    %78 = vector.extract_strided_slice %73 {offsets = [0, 0, 16], sizes = [1, 16, 8], strides = [1, 1, 1]} : vector<1x16x32xf32> to vector<1x16x8xf32>
    %c0_12 = arith.constant 0 : index
    %c1 = arith.constant 1 : index
    %c0_13 = arith.constant 0 : index
    %c0_14 = arith.constant 0 : index
    %79 = vector.load %arg3[%c0_12, %c1, %c0_13, %c0_14] : memref<1x4x16x8xf32, #tpu.memory_space<vmem>>, vector<1x1x16x8xf32>
    %80 = vector.shape_cast %79 : vector<1x1x16x8xf32> to vector<1x16x8xf32>
    %81 = vector.shape_cast %78 : vector<1x16x8xf32> to vector<1x1x16x8xf32>
    tpu.vector_store %arg3[%c0_12, %c1, %c0_13, %c0_14], %81 {strides = array<i32>} : memref<1x4x16x8xf32, #tpu.memory_space<vmem>>, vector<1x1x16x8xf32>,
    %82 = vector.extract_strided_slice %73 {offsets = [0, 0, 8], sizes = [1, 16, 8], strides = [1, 1, 1]} : vector<1x16x32xf32> to vector<1x16x8xf32>
    %c0_15 = arith.constant 0 : index
    %c2 = arith.constant 2 : index
    %c0_16 = arith.constant 0 : index
    %c0_17 = arith.constant 0 : index
    %83 = vector.load %arg3[%c0_15, %c2, %c0_16, %c0_17] : memref<1x4x16x8xf32, #tpu.memory_space<vmem>>, vector<1x1x16x8xf32>
    %84 = vector.shape_cast %83 : vector<1x1x16x8xf32> to vector<1x16x8xf32>
    %85 = vector.shape_cast %82 : vector<1x16x8xf32> to vector<1x1x16x8xf32>
    tpu.vector_store %arg3[%c0_15, %c2, %c0_16, %c0_17], %85 {strides = array<i32>} : memref<1x4x16x8xf32, #tpu.memory_space<vmem>>, vector<1x1x16x8xf32>,
    %86 = vector.extract_strided_slice %73 {offsets = [0, 0, 24], sizes = [1, 16, 8], strides = [1, 1, 1]} : vector<1x16x32xf32> to vector<1x16x8xf32>
    %c0_18 = arith.constant 0 : index
    %c3 = arith.constant 3 : index
    %c0_19 = arith.constant 0 : index
    %c0_20 = arith.constant 0 : index
    %87 = vector.load %arg3[%c0_18, %c3, %c0_19, %c0_20] : memref<1x4x16x8xf32, #tpu.memory_space<vmem>>, vector<1x1x16x8xf32>
    %88 = vector.shape_cast %87 : vector<1x1x16x8xf32> to vector<1x16x8xf32>
    %89 = vector.shape_cast %86 : vector<1x16x8xf32> to vector<1x1x16x8xf32>
    tpu.vector_store %arg3[%c0_18, %c3, %c0_19, %c0_20], %89 {strides = array<i32>} : memref<1x4x16x8xf32, #tpu.memory_space<vmem>>, vector<1x1x16x8xf32>,
    return
  }
  func.func @transform_0(%arg0: i32, %arg1: i32) -> (i32, i32, i32) {
    %c0_i32 = arith.constant 0 : i32
    %c0_i32_0 = arith.constant 0 : i32
    return %arg0, %arg1, %c0_i32 : i32, i32, i32
  }
  func.func @transform_1(%arg0: i32, %arg1: i32) -> (i32, i32, i32, i32) {
    %c0_i32 = arith.constant 0 : i32
    %c0_i32_0 = arith.constant 0 : i32
    %c0_i32_1 = arith.constant 0 : i32
    return %arg0, %c0_i32, %arg1, %c0_i32_0 : i32, i32, i32, i32
  }
}

</mosaic_0001>

<llo_original>
// kernel: tpu_custom_call.1
$region0: #{tpu_custom_call.1}
  #allocation0 [shape = 'u32[]', space=smem, size = 0x4, offset = 0x4, fixed_abs, tag = 'smem constant byte address 0x4 - core index']
  #allocation1 [shape = 'u32[144,128]{1,0:T(1,128)}', space=vmem, size = 0x12000, scoped, tag = 'internal scratch']
  %s0 = inlined_call_operand.hbm [shape: s32[2,8,32], index: 0, kind: input, shape index: {}]
  %s1 = inlined_call_operand.hbm [shape: s32[2,8,32], index: 1, kind: output, shape index: {}]
  %s2 = sld [smem:[#allocation0]]
  $region18: #{tpu_custom_call.1} parent=0
    _
  %s4 = ssub.s32 1, %s2
  %s5 = scalar_select 0, %s4, %s2
  $region1: #{tpu_custom_call.1} parent=0
    #allocation2 [shape = 'u8[8192]{0}', space=vmem, size = 0x2000, scoped, tag = 'input window, operand 0, single buffered']
    #allocation3 [shape = 's32[1]{0}', space=sflag, size = 0x4, scoped, tag = 'scoped memory for tpu_custom_call.1']
    #allocation4 [shape = 's32[1]{0}', space=sflag, size = 0x4, scoped, tag = 'scoped memory for tpu_custom_call.1']
    #allocation5 [shape = 'u8[8192]{0}', space=vmem, size = 0x2000, scoped, tag = 'output window, operand 0, single buffered']
    %6 = vsyncpa [#allocation3], 0
    %7 = vsyncpa [#allocation4], 0
    // Predicated region
    $region2: #{tpu_custom_call.1} parent=1 // pred_check
      _
    $region3: #{tpu_custom_call.1} parent=1 // pred_check_branch
      %9 = sbr.rel (0) target = $region5
    $region4: #{tpu_custom_call.1} parent=1 // pred_region
      %s11 = ssub.s32 256, 256
      %12 = vsyncadd [#allocation3], %s11
      %s13 = sshll.u32 [#allocation2], 4
      %s14 = int_to_ptr.vmem [resolvable:$true] %s13
      %19 = dma.hbm_to_vmem [thread:$0]  %s0, 256, %s14, [#allocation3], 128, 128, 8
    $region5: #{tpu_custom_call.1} parent=1 // pred_fallthru
      _
    // Predicated region
    $region6: #{tpu_custom_call.1} parent=1 // pred_check
      _
    $region7: #{tpu_custom_call.1} parent=1 // pred_check_branch
      %21 = sbr.rel (0) target = $region9
    $region8: #{tpu_custom_call.1} parent=1 // pred_region
      %22 = dma.done [#allocation3], 256
    $region9: #{tpu_custom_call.1} parent=1 // pred_fallthru
      _
    %v23 = vld [vmem:[#allocation2] sm:$0xff]
    %v24 = vld [vmem:[#allocation2 + $0x8] sm:$0xff]
    %vm25 = vcmask 1047808
    %26 = vrot.lane.b32.xlu0 %v23, 32
    %v27 = vpop.permute.xlu0 %26
    %v28 = vsel %vm25, %v27, %v23
    %29 = vrot.lane.b32.xlu0 %v24, 32
    %v30 = vpop.permute.xlu0 %29
    %v31 = vsel %vm25, %v30, %v24
    %32 = vrot.lane.b32.xlu0 %v28, 32
    %v33 = vpop.permute.xlu0 %32
    %34 = vrot.lane.b32.xlu0 %v31, 32
    %v35 = vpop.permute.xlu0 %34
    %v36 = vsel %vm25, %v33, %v23
    %v37 = vsel %vm25, %v35, %v24
    %38 = vrot.lane.b32.xlu0 %v36, 101
    %v39 = vpop.permute.xlu0 %38
    %40 = vrot.lane.b32.xlu0 %v37, 101
    %v41 = vpop.permute.xlu0 %40
    %vm42 = vcmask 261120
    %43 = vst.msk [vmem:[#allocation5] sm:$0xff] %vm42, %v39
    %44 = vst.msk [vmem:[#allocation5 + $0x8] sm:$0xff] %vm42, %v41
    // Predicated region
    $region10: #{tpu_custom_call.1} parent=1 // pred_check
      _
    $region11: #{tpu_custom_call.1} parent=1 // pred_check_branch
      %46 = sbr.rel (0) target = $region13
    $region12: #{tpu_custom_call.1} parent=1 // pred_region
      %s48 = ssub.s32 256, 256
      %49 = vsyncadd [#allocation4], %s48
      %s50 = sshll.u32 [#allocation5], 4
      %s51 = int_to_ptr.vmem [resolvable:$true] %s50
      %56 = dma.vmem_to_hbm [thread:$0]  %s51, 256, %s1, [#allocation4], 128, 128, 8
    $region13: #{tpu_custom_call.1} parent=1 // pred_fallthru
      _
    // Predicated region
    $region14: #{tpu_custom_call.1} parent=1 // pred_check
      _
    $region15: #{tpu_custom_call.1} parent=1 // pred_check_branch
      %58 = sbr.rel (0) target = $region17
    $region16: #{tpu_custom_call.1} parent=1 // pred_region
      %59 = dma.done [#allocation4], 256
    $region17: #{tpu_custom_call.1} parent=1 // pred_fallthru
      _
    %60 = vsyncpa [#allocation3], 1
    %61 = vsyncpa [#allocation4], 1

// kernel: tpu_custom_call.1
$region0: #{tpu_custom_call.1}
  #allocation0 [shape = 'u32[]', space=smem, size = 0x4, offset = 0x4, fixed_abs, tag = 'smem constant byte address 0x4 - core index']
  #allocation1 [shape = 'u32[144,128]{1,0:T(1,128)}', space=vmem, size = 0x12000, scoped, tag = 'internal scratch']
  %s0 = inlined_call_operand.hbm [shape: f32[2,32,32], index: 0, kind: input, shape index: {}]
  %s1 = inlined_call_operand.vmem [shape: f32[2,4,32,8], index: 1, kind: output, shape index: {}]
  %s2 = sld [smem:[#allocation0]]
  $region75: #{tpu_custom_call.1} parent=0
    _
  %s4 = ssub.s32 1, %s2
  %s5 = scalar_select 0, %s4, %s2
  $region1: #{tpu_custom_call.1} parent=0
    #allocation2 [shape = 'u8[16384]{0}', space=vmem, size = 0x4000, scoped, tag = 'input window, operand 0']
    #allocation3 [shape = 's32[2]{0}', space=sflag, size = 0x8, scoped, tag = 'scoped memory for tpu_custom_call.1']
    #allocation4 [shape = 'u8[65536]{0}', space=vmem, size = 0x10000, scoped, tag = 'output window, operand 0']
    %6 = vsyncpa [#allocation3], 0
    %s7 = scalar_lea.sflag [#allocation3], 1
    %8 = vsyncpa %s7, 0
    loop: start=0, step=1, limit=6
    $region2: #{tpu_custom_call.1} parent=1 // loop_pre_header
      _
    $region3: #{tpu_custom_call.1} parent=1 // loop_header
      %s10 = sphi 0, %s14
      %p11 = scmp.ge.s32.totalorder %s10, 6
      %s17 = sphi 0, %s29
      %s18 = sphi 0, %s25
      %s19 = sphi 0, %s17
      %s20 = sphi 0, %s18
      %s21 = sphi 0, %s19
      %s22 = sphi 0, %s20
      %s34 = sphi 0, %s36
      %s37 = sphi 0, %s34
      %s38 = sphi 0, %s37
      %s54 = sphi 0, %s38
      %s62 = sphi 0, %s64
      %s65 = sphi 0, %s62
      %s66 = sphi 0, %s65
      %s82 = sphi 0, %s66
    $region4: #{tpu_custom_call.1} parent=1 // loop_header_branch
      %13 = sbr.rel (%p11) target = $region8
    $region5: #{tpu_custom_call.1} parent=1 // loop_body
      %s15 = ssub.s32 %s10, 1
      %s16 = ssub.s32 %s10, 2
      %s23 = sadd.s32 1, %s18
      %p24 = scmp.ge.s32.totalorder %s23, 2
      %s25 = scalar_select %p24, 0, %s23
      %s26 = sadd.s32 1, %s17
      %s27 = scalar_select %p24, %s26, %s17
      %p28 = scmp.ge.s32.totalorder %s27, 2
      %s29 = scalar_select %p28, 0, %s27
      %s30 = ssub.s32 %s17, %s29
      %s31 = ssub.s32 %s18, %s25
      %s32 = sor.u32 %s30, %s31
      %p33 = scmp.eq.s32.totalorder %s32, 0
      %s35 = sadd.s32 %s34, 1
      %s36 = scalar_select %p33, %s34, %s35
      %p39 = pneg %p33
      %p40 = scmp.eq.s32.totalorder %s10, 3
      %p41 = por %p39, %p40
      %p42 = scmp.ne.s32.totalorder %s34, %s37
      %p43 = scmp.eq.s32.totalorder %s10, 0
      %p44 = por %p42, %p43
      %p45 = scmp.ne.s32.totalorder %s34, %s37
      %p46 = scmp.eq.s32.totalorder %s15, 3
      %p47 = por %p45, %p46
      %p48 = scmp.ne.s32.totalorder %s37, %s38
      %p49 = scmp.eq.s32.totalorder %s15, 0
      %p50 = por %p48, %p49
      %p51 = scmp.ne.s32.totalorder %s37, %s38
      %p52 = scmp.eq.s32.totalorder %s16, 3
      %p53 = por %p51, %p52
      %p55 = scmp.ne.s32.totalorder %s38, %s54
      %p56 = scmp.eq.s32.totalorder %s16, 0
      %p57 = por %p55, %p56
      %s58 = ssub.s32 %s17, %s29
      %s59 = ssub.s32 %s18, %s25
      %s60 = sor.u32 %s58, %s59
      %p61 = scmp.eq.s32.totalorder %s60, 0
      %s63 = sadd.s32 %s62, 1
      %s64 = scalar_select %p61, %s62, %s63
      %p67 = pneg %p61
      %p68 = scmp.eq.s32.totalorder %s10, 3
      %p69 = por %p67, %p68
      %p70 = scmp.ne.s32.totalorder %s62, %s65
      %p71 = scmp.eq.s32.totalorder %s10, 0
      %p72 = por %p70, %p71
      %p73 = scmp.ne.s32.totalorder %s62, %s65
      %p74 = scmp.eq.s32.totalorder %s15, 3
      %p75 = por %p73, %p74
      %p76 = scmp.ne.s32.totalorder %s65, %s66
      %p77 = scmp.eq.s32.totalorder %s15, 0
      %p78 = por %p76, %p77
      %p79 = scmp.ne.s32.totalorder %s65, %s66
      %p80 = scmp.eq.s32.totalorder %s16, 3
      %p81 = por %p79, %p80
      %p83 = scmp.ne.s32.totalorder %s66, %s82
      %p84 = scmp.eq.s32.totalorder %s16, 0
      %p85 = por %p83, %p84
      %p86 = scmp.le.s32.totalorder 1, %s10
      %p87 = scmp.lt.s32.totalorder %s10, 5
      %p88 = pnand %p86, %p87
      %p89 = pneg %p88
      // Predicated region
      $region9: #{tpu_custom_call.1} parent=5 // pred_check
        _
      $region10: #{tpu_custom_call.1} parent=5 // pred_check_branch
        %91 = sbr.rel (%p88) target = $region12
      $region11: #{tpu_custom_call.1} parent=5 // pred_region
        %s92 = ssub.s32 %s10, 1
      $region12: #{tpu_custom_call.1} parent=5 // pred_fallthru
        _
      %p93 = scmp.lt.s32.totalorder %s10, 4
      // Predicated region
      $region13: #{tpu_custom_call.1} parent=5 // pred_check
        %p94 = pneg %p93
      $region14: #{tpu_custom_call.1} parent=5 // pred_check_branch
        %96 = sbr.rel (%p94) target = $region16
      $region15: #{tpu_custom_call.1} parent=5 // pred_region
        // Predicated region
        $region17: #{tpu_custom_call.1} parent=15 // pred_check
          %p97 = pneg %p44
        $region18: #{tpu_custom_call.1} parent=15 // pred_check_branch
          %99 = sbr.rel (%p97) target = $region20
        $region19: #{tpu_custom_call.1} parent=15 // pred_region
          %s100 = sand.u32 %s34, 1
          %s101 = scalar_lea.sflag [#allocation3], %s100
          %s102 = sand.u32 %s34, 1
          %s103 = smul.addr %s102, 16
          %s104 = scalar_lea.vmem [#allocation2], %s103
          %s105 = smul.u32 2, %s18
          %s107 = ssub.s32 256, 256
          %108 = vsyncadd %s101, %s107
          %s109 = smul.addr %s17, 4
          %s110 = sadd.s32 %s105, %s109
          %s111 = smul.addr %s110, 128
          %s112 = scalar_lea.hbm %s0, %s111
          %s113 = sshll.u32 %s104, 4
          %s114 = int_to_ptr.vmem [resolvable:$true] %s113
          %119 = dma.hbm_to_vmem [thread:$0]  %s112, 256, %s114, %s101, 128, 128, 8
        $region20: #{tpu_custom_call.1} parent=15 // pred_fallthru
          _
      $region16: #{tpu_custom_call.1} parent=5 // pred_fallthru
        _
      %p120 = scmp.le.s32.totalorder 1, %s10
      %p121 = scmp.lt.s32.totalorder %s10, 5
      %p122 = pnand %p120, %p121
      %p123 = pneg %p122
      // Predicated region
      $region21: #{tpu_custom_call.1} parent=5 // pred_check
        _
      $region22: #{tpu_custom_call.1} parent=5 // pred_check_branch
        %125 = sbr.rel (%p122) target = $region24
      $region23: #{tpu_custom_call.1} parent=5 // pred_region
        %s126 = ssub.s32 %s10, 1
        %s127 = sand.u32 %s37, 1
        %s128 = scalar_lea.sflag [#allocation3], %s127
        %s129 = sand.u32 %s37, 1
        %s130 = smul.addr %s129, 16
        %s131 = scalar_lea.vmem [#allocation2], %s130
        // Predicated region
        $region25: #{tpu_custom_call.1} parent=23 // pred_check
          %p132 = pneg %p50
        $region26: #{tpu_custom_call.1} parent=23 // pred_check_branch
          %134 = sbr.rel (%p132) target = $region28
        $region27: #{tpu_custom_call.1} parent=23 // pred_region
          %135 = dma.done %s128, 256
        $region28: #{tpu_custom_call.1} parent=23 // pred_fallthru
          _
        %s136 = sand.u32 %s37, 1
        %s137 = scalar_lea.sflag [#allocation3], %s136
        %s138 = sand.u32 %s37, 1
        %s139 = smul.addr %s138, 16
        %s140 = scalar_lea.vmem [#allocation2], %s139
        %p141 = pneg %p50
        %p142 = pneg %p47
        %p143 = pneg %p78
        %p144 = pneg %p75
        %s145 = sand.u32 %s65, 1
        %s146 = sand.u32 %s65, 1
        %s147 = smul.addr %s146, 64
        %s148 = scalar_lea.vmem [#allocation4], %s147
        %s149 = smul.u32 2, %s20
        %s150 = smul.u32 2, %s20
        %v151 = vld [vmem:[%s131] sm:$0xff]
        %v152 = vld [vmem:[%s131 + $0x8] sm:$0xff]
        %v153 = vlaneseq
        %v154 = vand.u32 %v153, 127
        %v155 = vand.u32 %v154, 3
        %vm156 = vcmp.ge.s32.totalorder %v155, 1
        %vm157 = vcmp.lt.s32.totalorder %v155, 2
        %vm158 = vmand %vm156, %vm157
        %vm159 = vcmp.ge.s32.totalorder %v155, 2
        %vm160 = vcmp.lt.s32.totalorder %v155, 3
        %vm161 = vmand %vm159, %vm160
        %v162 = vand.u32 %v154, 7
        %vm163 = vcmp.ge.s32.totalorder %v162, 2
        %vm164 = vcmp.lt.s32.totalorder %v162, 4
        %vm165 = vmand %vm163, %vm164
        %vm166 = vcmp.ge.s32.totalorder %v162, 4
        %vm167 = vcmp.lt.s32.totalorder %v162, 6
        %vm168 = vmand %vm166, %vm167
        %v169 = vand.u32 %v154, 15
        %vm170 = vcmp.ge.s32.totalorder %v169, 4
        %vm171 = vcmp.lt.s32.totalorder %v169, 8
        %vm172 = vmand %vm170, %vm171
        %vm173 = vcmp.ge.s32.totalorder %v169, 8
        %vm174 = vcmp.lt.s32.totalorder %v169, 12
        %vm175 = vmand %vm173, %vm174
        %178 = vrot.lane.b32.xlu0 %v151, 127
        %v179 = vpop.permute.xlu0 %178
        %180 = vrot.lane.b32.xlu0 %v152, 127
        %v181 = vpop.permute.xlu0 %180
        %184 = vrot.lane.b32.xlu0 %v151, 31
        %v185 = vpop.permute.xlu0 %184
        %186 = vrot.lane.b32.xlu0 %v152, 31
        %v187 = vpop.permute.xlu0 %186
        %vm190 = vcmask 252928
        %v191 = vsel %vm190, %v179, %v185
        %v192 = vsel %vm190, %v181, %v187
        %193 = vrot.lane.b32.xlu0 %v151, 97
        %v194 = vpop.permute.xlu0 %193
        %195 = vrot.lane.b32.xlu0 %v152, 97
        %v196 = vpop.permute.xlu0 %195
        %199 = vrot.lane.b32.xlu0 %v151, 1
        %v200 = vpop.permute.xlu0 %199
        %201 = vrot.lane.b32.xlu0 %v152, 1
        %v202 = vpop.permute.xlu0 %201
        %vm205 = vcmask 7168
        %v206 = vsel %vm205, %v194, %v200
        %v207 = vsel %vm205, %v196, %v202
        %v208 = vsel %vm161, 1, 0
        %vm209 = vcmp.eq.s32.totalorder %v208, 1
        %v210 = vsel %vm209, %v206, %v151
        %v211 = vsel %vm209, %v207, %v152
        %v212 = vsel %vm158, 1, 0
        %vm213 = vcmp.eq.s32.totalorder %v212, 1
        %v214 = vsel %vm213, %v191, %v210
        %v215 = vsel %vm213, %v192, %v211
        %218 = vrot.lane.b32.xlu0 %v214, 126
        %v219 = vpop.permute.xlu0 %218
        %220 = vrot.lane.b32.xlu0 %v215, 126
        %v221 = vpop.permute.xlu0 %220
        %224 = vrot.lane.b32.xlu0 %v214, 30
        %v225 = vpop.permute.xlu0 %224
        %226 = vrot.lane.b32.xlu0 %v215, 30
        %v227 = vpop.permute.xlu0 %226
        %vm230 = vcmask 244736
        %v231 = vsel %vm230, %v219, %v225
        %v232 = vsel %vm230, %v221, %v227
        %233 = vrot.lane.b32.xlu0 %v214, 98
        %v234 = vpop.permute.xlu0 %233
        %235 = vrot.lane.b32.xlu0 %v215, 98
        %v236 = vpop.permute.xlu0 %235
        %239 = vrot.lane.b32.xlu0 %v214, 2
        %v240 = vpop.permute.xlu0 %239
        %241 = vrot.lane.b32.xlu0 %v215, 2
        %v242 = vpop.permute.xlu0 %241
        %vm245 = vcmask 15360
        %v246 = vsel %vm245, %v234, %v240
        %v247 = vsel %vm245, %v236, %v242
        %v248 = vsel %vm168, 1, 0
        %vm249 = vcmp.eq.s32.totalorder %v248, 1
        %v250 = vsel %vm249, %v246, %v214
        %v251 = vsel %vm249, %v247, %v215
        %v252 = vsel %vm165, 1, 0
        %vm253 = vcmp.eq.s32.totalorder %v252, 1
        %v254 = vsel %vm253, %v231, %v250
        %v255 = vsel %vm253, %v232, %v251
        %258 = vrot.lane.b32.xlu0 %v254, 124
        %v259 = vpop.permute.xlu0 %258
        %260 = vrot.lane.b32.xlu0 %v255, 124
        %v261 = vpop.permute.xlu0 %260
        %264 = vrot.lane.b32.xlu0 %v254, 28
        %v265 = vpop.permute.xlu0 %264
        %266 = vrot.lane.b32.xlu0 %v255, 28
        %v267 = vpop.permute.xlu0 %266
        %vm270 = vcmask 228352
        %v271 = vsel %vm270, %v259, %v265
        %v272 = vsel %vm270, %v261, %v267
        %273 = vrot.lane.b32.xlu0 %v254, 100
        %v274 = vpop.permute.xlu0 %273
        %275 = vrot.lane.b32.xlu0 %v255, 100
        %v276 = vpop.permute.xlu0 %275
        %279 = vrot.lane.b32.xlu0 %v254, 4
        %v280 = vpop.permute.xlu0 %279
        %281 = vrot.lane.b32.xlu0 %v255, 4
        %v282 = vpop.permute.xlu0 %281
        %vm285 = vcmask 31744
        %v286 = vsel %vm285, %v274, %v280
        %v287 = vsel %vm285, %v276, %v282
        %v288 = vsel %vm175, 1, 0
        %vm289 = vcmp.eq.s32.totalorder %v288, 1
        %v290 = vsel %vm289, %v286, %v254
        %v291 = vsel %vm289, %v287, %v255
        %v292 = vsel %vm172, 1, 0
        %vm293 = vcmp.eq.s32.totalorder %v292, 1
        %v294 = vsel %vm293, %v271, %v290
        %v295 = vsel %vm293, %v272, %v291
        %vm296 = vcmask 64512
        %297 = vst.msk [vmem:[%s148] sm:$0xff] %vm296, %v294
        %298 = vst.msk [vmem:[%s148 + $0x8] sm:$0xff] %vm296, %v295
        %301 = vrot.lane.b32.xlu0 %v294, 112
        %v302 = vpop.permute.xlu0 %301
        %303 = vrot.lane.b32.xlu0 %v295, 112
        %v304 = vpop.permute.xlu0 %303
        %s307 = scalar_lea.vmem %s148, 16 [#allocation4]
        %308 = vst.msk [vmem:[%s307] sm:$0xff] %vm296, %v302
        %309 = vst.msk [vmem:[%s307 + $0x8] sm:$0xff] %vm296, %v304
        %310 = vrot.lane.b32.xlu0 %v294, 120
        %v311 = vpop.permute.xlu0 %310
        %312 = vrot.lane.b32.xlu0 %v295, 120
        %v313 = vpop.permute.xlu0 %312
        %s316 = scalar_lea.vmem %s148, 32 [#allocation4]
        %317 = vst.msk [vmem:[%s316] sm:$0xff] %vm296, %v311
        %318 = vst.msk [vmem:[%s316 + $0x8] sm:$0xff] %vm296, %v313
        %319 = vrot.lane.b32.xlu0 %v294, 104
        %v320 = vpop.permute.xlu0 %319
        %321 = vrot.lane.b32.xlu0 %v295, 104
        %v322 = vpop.permute.xlu0 %321
        %s325 = scalar_lea.vmem %s148, 48 [#allocation4]
        %326 = vst.msk [vmem:[%s325] sm:$0xff] %vm296, %v320
        %327 = vst.msk [vmem:[%s325 + $0x8] sm:$0xff] %vm296, %v322
        %s328 = sand.u32 %s65, 1
        %s329 = sand.u32 %s65, 1
        %s330 = smul.addr %s329, 64
        %s331 = scalar_lea.vmem [#allocation4], %s330
        // Predicated region
        $region29: #{tpu_custom_call.1} parent=23 // pred_check
          %p332 = pneg %p75
        $region30: #{tpu_custom_call.1} parent=23 // pred_check_branch
          %334 = sbr.rel (%p332) target = $region32
        $region31: #{tpu_custom_call.1} parent=23 // pred_region
          %s335 = smul.u32 2, %s20
          %s336 = smul.addr %s19, 16
          %s337 = sadd.s32 %s335, %s336
          %s338 = smul.addr %s337, 8
          %s339 = scalar_lea.vmem %s1, %s338
          // Predicated region
          $region33: #{tpu_custom_call.1} parent=31 // pred_check
            _
          $region34: #{tpu_custom_call.1} parent=31 // pred_check_branch
            %341 = sbr.rel (0) target = $region36
          $region35: #{tpu_custom_call.1} parent=31 // pred_region
            // Predicated region
            $region37: #{tpu_custom_call.1} parent=35 // pred_check
              _
            $region38: #{tpu_custom_call.1} parent=35 // pred_check_branch
              %343 = sbr.rel (0) target = $region40
            $region39: #{tpu_custom_call.1} parent=35 // pred_region
              // Predicated region
              $region52: #{tpu_custom_call.1} parent=39 // pred_check
                _
              $region53: #{tpu_custom_call.1} parent=39 // pred_check_branch
                %373 = sbr.rel (0) target = $region55
              $region54: #{tpu_custom_call.1} parent=39 // pred_region
                loop: start=0, step=1, limit=1
                $region56: #{tpu_custom_call.1} parent=54 // loop_pre_header
                  _
                $region57: #{tpu_custom_call.1} parent=54 // loop_header
                  %s375 = sphi 0, %s379
                  %p376 = scmp.ge.s32.totalorder %s375, 1
                  %s380 = sphi %s331, %s331
                  %s381 = sphi %s339, %s339
                $region58: #{tpu_custom_call.1} parent=54 // loop_header_branch
                  %378 = sbr.rel (%p376) target = $region62
                $region59: #{tpu_custom_call.1} parent=54 // loop_body
                  %v382 = vld [vmem:[%s380] sm:$0xff]
                  %383 = vst [vmem:[%s381] sm:$0xff] %v382
                  %v384 = vld [vmem:[%s380 + $0x8] sm:$0xff]
                  %385 = vst [vmem:[%s381 + $0x8] sm:$0xff] %v384
                  %v386 = vld [vmem:[%s380 + $0x10] sm:$0xff]
                  %387 = vst [vmem:[%s381 + $0x20] sm:$0xff] %v386
                  %v388 = vld [vmem:[%s380 + $0x18] sm:$0xff]
                  %389 = vst [vmem:[%s381 + $0x28] sm:$0xff] %v388
                  %v390 = vld [vmem:[%s380 + $0x20] sm:$0xff]
                  %391 = vst [vmem:[%s381 + $0x40] sm:$0xff] %v390
                  %v392 = vld [vmem:[%s380 + $0x28] sm:$0xff]
                  %393 = vst [vmem:[%s381 + $0x48] sm:$0xff] %v392
                  %v394 = vld [vmem:[%s380 + $0x30] sm:$0xff]
                  %395 = vst [vmem:[%s381 + $0x60] sm:$0xff] %v394
                  %v396 = vld [vmem:[%s380 + $0x38] sm:$0xff]
                  %397 = vst [vmem:[%s381 + $0x68] sm:$0xff] %v396
                $region60: #{tpu_custom_call.1} parent=54 // loop_footer
                  %s379 = sadd.s32 1, %s375
                $region61: #{tpu_custom_call.1} parent=54 // loop_footer_branch
                  %374 = sbr.rel target = $region57
                $region62: #{tpu_custom_call.1} parent=54 // loop_exit
                  _
              $region55: #{tpu_custom_call.1} parent=39 // pred_fallthru
                _
              // Predicated region
              $region63: #{tpu_custom_call.1} parent=39 // pred_check
                _
              $region64: #{tpu_custom_call.1} parent=39 // pred_check_branch
                %399 = sbr.rel target = $region66
              $region65: #{tpu_custom_call.1} parent=39 // pred_region
                _
              $region66: #{tpu_custom_call.1} parent=39 // pred_fallthru
                _
            $region40: #{tpu_custom_call.1} parent=35 // pred_fallthru
              _
            // Predicated region
            $region41: #{tpu_custom_call.1} parent=35 // pred_check
              _
            $region42: #{tpu_custom_call.1} parent=35 // pred_check_branch
              %345 = sbr.rel target = $region44
            $region43: #{tpu_custom_call.1} parent=35 // pred_region
              %s347 = ssub.s32 256, 1
              loop: start=0, step=1, limit=1
              $region45: #{tpu_custom_call.1} parent=43 // loop_pre_header
                _
              $region46: #{tpu_custom_call.1} parent=43 // loop_header
                %s349 = sphi 0, %s353
                %p350 = scmp.ge.s32.totalorder %s349, 1
                %s354 = sphi %s331, %s331
                %s355 = sphi %s339, %s339
              $region47: #{tpu_custom_call.1} parent=43 // loop_header_branch
                %352 = sbr.rel (%p350) target = $region51
              $region48: #{tpu_custom_call.1} parent=43 // loop_body
                %v356 = vld [vmem:[%s354] sm:%s347]
                %357 = vst [vmem:[%s355] sm:%s347] %v356
                %v358 = vld [vmem:[%s354 + $0x8] sm:%s347]
                %359 = vst [vmem:[%s355 + $0x8] sm:%s347] %v358
                %v360 = vld [vmem:[%s354 + $0x10] sm:%s347]
                %361 = vst [vmem:[%s355 + $0x20] sm:%s347] %v360
                %v362 = vld [vmem:[%s354 + $0x18] sm:%s347]
                %363 = vst [vmem:[%s355 + $0x28] sm:%s347] %v362
                %v364 = vld [vmem:[%s354 + $0x20] sm:%s347]
                %365 = vst [vmem:[%s355 + $0x40] sm:%s347] %v364
                %v366 = vld [vmem:[%s354 + $0x28] sm:%s347]
                %367 = vst [vmem:[%s355 + $0x48] sm:%s347] %v366
                %v368 = vld [vmem:[%s354 + $0x30] sm:%s347]
                %369 = vst [vmem:[%s355 + $0x60] sm:%s347] %v368
                %v370 = vld [vmem:[%s354 + $0x38] sm:%s347]
                %371 = vst [vmem:[%s355 + $0x68] sm:%s347] %v370
              $region49: #{tpu_custom_call.1} parent=43 // loop_footer
                %s353 = sadd.s32 1, %s349
              $region50: #{tpu_custom_call.1} parent=43 // loop_footer_branch
                %348 = sbr.rel target = $region46
              $region51: #{tpu_custom_call.1} parent=43 // loop_exit
                _
            $region44: #{tpu_custom_call.1} parent=35 // pred_fallthru
              _
          $region36: #{tpu_custom_call.1} parent=31 // pred_fallthru
            _
          %400 = vnop
        $region32: #{tpu_custom_call.1} parent=23 // pred_fallthru
          _
      $region24: #{tpu_custom_call.1} parent=5 // pred_fallthru
        _
      %p401 = scmp.le.s32.totalorder 2, %s10
      // Predicated region
      $region67: #{tpu_custom_call.1} parent=5 // pred_check
        %p402 = pneg %p401
      $region68: #{tpu_custom_call.1} parent=5 // pred_check_branch
        %404 = sbr.rel (%p402) target = $region70
      $region69: #{tpu_custom_call.1} parent=5 // pred_region
        %s405 = ssub.s32 %s10, 2
        // Predicated region
        $region71: #{tpu_custom_call.1} parent=69 // pred_check
          %p406 = pneg %p81
        $region72: #{tpu_custom_call.1} parent=69 // pred_check_branch
          %408 = sbr.rel (%p406) target = $region74
        $region73: #{tpu_custom_call.1} parent=69 // pred_region
          %s409 = sand.u32 %s66, 1
          %s410 = sand.u32 %s66, 1
          %s411 = smul.addr %s410, 64
          %s412 = scalar_lea.vmem [#allocation4], %s411
        $region74: #{tpu_custom_call.1} parent=69 // pred_fallthru
          _
      $region70: #{tpu_custom_call.1} parent=5 // pred_fallthru
        _
    $region6: #{tpu_custom_call.1} parent=1 // loop_footer
      %s14 = sadd.s32 1, %s10
    $region7: #{tpu_custom_call.1} parent=1 // loop_footer_branch
      %9 = sbr.rel target = $region3
    $region8: #{tpu_custom_call.1} parent=1 // loop_exit
      _
    %413 = vsyncpa [#allocation3], 1
    %s414 = scalar_lea.sflag [#allocation3], 1
    %415 = vsyncpa %s414, 1

</llo_original>
